<compile_context>
chip_gen: v7x
topology: tpu7x:2x2x1
jax: 0.10.0
libtpu: 0.0.40
codegen_flags: <defaults>
</compile_context>

<pallas_src>
import functools

import jax
import jax.numpy as jnp
from jax.experimental import pallas as pl
from jax.experimental.pallas import tpu as pltpu


def _round_up(a: int, m: int) -> int:
    return ((a + m - 1) // m) * m


def _mlp_kernel(x_ref, w1_ref, b1_ref, w2_ref, b2_ref, o_ref):
    # Linear(784, 256): MXU matmul in the streamed dtype, f32 accumulation.
    h = jnp.dot(x_ref[...], w1_ref[...], preferred_element_type=jnp.float32)
    # Bias add + ReLU in f32 on the VPU (v5e has no bf16 VPU).
    h = jnp.maximum(h + b1_ref[...], 0.0)
    # Linear(256, 128-padded): explicit cast of the f32 accumulator to the MXU
    # input dtype (no-op for f32 weights; intentional rounding for bf16).
    y = jnp.dot(h.astype(w2_ref.dtype), w2_ref[...],
                preferred_element_type=jnp.float32)
    o_ref[...] = (y + b2_ref[...]).astype(o_ref.dtype)


def my_sequential_forward(x, w1, b1, w2, b2, *,
                          weights_dtype=jnp.float32, tb: int = 512):
    """Fused Linear->ReLU->Linear forward.

    x  : (B, 784)            float32
    w1 : (784, 256) (== W1^T), b1 : (1, 256)
    w2 : (256, 10)  (== W2^T), b2 : (1, 10)
    returns (B, 10) float32
    """
    B, d_in = x.shape
    d_hid = w1.shape[1]
    d_out = w2.shape[1]

    # --- Lane-dense output: zero-pad the tiny output dim up to 128 lanes. ---
    d_out_pad = _round_up(d_out, 128)
    w1_c = w1.astype(weights_dtype)
    w2_p = jnp.pad(w2.astype(weights_dtype), ((0, 0), (0, d_out_pad - d_out)))
    b1_c = b1.astype(jnp.float32)
    b2_p = jnp.pad(b2.astype(jnp.float32), ((0, 0), (0, d_out_pad - d_out)))

    # --- Batch tiling: TB rows per grid step, zero-pad B to a multiple. ---
    tb = min(tb, _round_up(B, 8))          # small batches -> one aligned tile
    b_pad = _round_up(B, tb)
    x_c = x.astype(weights_dtype)
    if b_pad != B:
        x_c = jnp.pad(x_c, ((0, b_pad - B), (0, 0)))
    grid = (b_pad // tb,)

    itm = jnp.dtype(weights_dtype).itemsize
    cost = pl.CostEstimate(
        flops=2 * b_pad * (d_in * d_hid + d_hid * d_out_pad),
        transcendentals=0,
        bytes_accessed=int(b_pad * d_in * itm            # streamed x
                           + d_in * d_hid * itm          # resident W1 (once)
                           + d_hid * d_out_pad * itm     # resident W2 (once)
                           + (d_hid + d_out_pad) * 4     # biases
                           + b_pad * d_out_pad * 4))     # output

    out = pl.pallas_call(
        _mlp_kernel,
        out_shape=jax.ShapeDtypeStruct((b_pad, d_out_pad), jnp.float32),
        grid=grid,
        in_specs=[
            pl.BlockSpec((tb, d_in), lambda i: (i, 0)),          # x tile streams
            pl.BlockSpec((d_in, d_hid), lambda i: (0, 0)),       # W1 resident
            pl.BlockSpec((1, d_hid), lambda i: (0, 0)),          # b1 resident
            pl.BlockSpec((d_hid, d_out_pad), lambda i: (0, 0)),  # W2 resident
            pl.BlockSpec((1, d_out_pad), lambda i: (0, 0)),      # b2 resident
        ],
        out_specs=pl.BlockSpec((tb, d_out_pad), lambda i: (i, 0)),
        compiler_params=pltpu.CompilerParams(
            dimension_semantics=("parallel",)),   # megacore split on v7x
        cost_estimate=cost,
    )(x_c, w1_c, b1_c, w2_p, b2_p)

    # Strip batch padding and the lane padding of the 10-wide output.
    return out[:B, :d_out]


def _init_linear(key, fan_in, fan_out):
    """Deterministic init mirroring nn.Linear default (Kaiming-uniform-ish)."""
    kw, kb = jax.random.split(key)
    bound = 1.0 / jnp.sqrt(fan_in)
    # stored as (fan_in, fan_out) == W^T relative to PyTorch's (out, in)
    w = jax.random.uniform(kw, (fan_in, fan_out), jnp.float32, -bound, bound)
    b = jax.random.uniform(kb, (1, fan_out), jnp.float32, -bound, bound)
    return w, b


if __name__ == "__main__":
    key = jax.random.PRNGKey(0)
    k_x, k_l1, k_l2 = jax.random.split(key, 3)

    B, D_IN, D_HID, D_OUT = 2, 784, 256, 10
    x = jax.random.uniform(k_x, (B, D_IN), jnp.float32)  # torch.rand(2, 784)

    w1, b1 = _init_linear(k_l1, D_IN, D_HID)
    w2, b2 = _init_linear(k_l2, D_HID, D_OUT)

    # Reference (same math as the PyTorch module, f32 end to end).
    y_ref = jnp.maximum(x @ w1 + b1, 0.0) @ w2 + b2

    # f32 path: exact module semantics.
    fwd_f32 = jax.jit(functools.partial(my_sequential_forward,
                                        weights_dtype=jnp.float32))
    y32 = fwd_f32(x, w1, b1, w2, b2)
    jax.block_until_ready(y32)
    assert y32.shape == (B, D_OUT)
    assert jnp.allclose(y32, y_ref, atol=1e-4, rtol=1e-4)

    # bf16 weights + streamed activations (halves HBM traffic, 2x MXU on
    # v6e/v7x); accumulation and bias/ReLU stay in f32.
    fwd_bf16 = jax.jit(functools.partial(my_sequential_forward,
                                         weights_dtype=jnp.bfloat16))
    y16 = fwd_bf16(x, w1, b1, w2, b2)
    jax.block_until_ready(y16)
    assert y16.shape == (B, D_OUT)
    assert jnp.allclose(y16, y_ref, atol=3e-2, rtol=3e-2)

    print("KERNEL_OK")
</pallas_src>

<mosaic_0001>
module attributes {stable_mosaic.version = 11 : i64} {
  func.func @_mlp_kernel(%arg0: i32, %arg1: memref<8x784xf32, #tpu.memory_space<vmem>>, %arg2: memref<784x256xf32, #tpu.memory_space<vmem>>, %arg3: memref<1x256xf32, #tpu.memory_space<vmem>>, %arg4: memref<256x128xf32, #tpu.memory_space<vmem>>, %arg5: memref<1x128xf32, #tpu.memory_space<vmem>>, %arg6: memref<8x128xf32, #tpu.memory_space<vmem>>) attributes {dimension_semantics = [#tpu.dimension_semantics<parallel>], iteration_bounds = array<i64: 1>, scalar_prefetch = 0 : i64, scratch_operands = 0 : i64, tpu.core_type = #tpu.core_type<tc>, window_params = [{transform_indices = @transform_0, window_bounds = array<i64: 8, 784>}, {pipeline_mode = #tpu.pipeline_mode<synchronous>, transform_indices = @transform_1, window_bounds = array<i64: 784, 256>}, {pipeline_mode = #tpu.pipeline_mode<synchronous>, transform_indices = @transform_2, window_bounds = array<i64: 1, 256>}, {pipeline_mode = #tpu.pipeline_mode<synchronous>, transform_indices = @transform_3, window_bounds = array<i64: 256, 128>}, {pipeline_mode = #tpu.pipeline_mode<synchronous>, transform_indices = @transform_4, window_bounds = array<i64: 1, 128>}, {transform_indices = @transform_5, window_bounds = array<i64: 8, 128>}]} {
    %c0 = arith.constant 0 : index
    %c0_0 = arith.constant 0 : index
    %0 = vector.load %arg1[%c0, %c0_0] : memref<8x784xf32, #tpu.memory_space<vmem>>, vector<8x784xf32>
    %c0_1 = arith.constant 0 : index
    %c0_2 = arith.constant 0 : index
    %1 = vector.load %arg2[%c0_1, %c0_2] : memref<784x256xf32, #tpu.memory_space<vmem>>, vector<784x256xf32>
    %cst = arith.constant dense<0.000000e+00> : vector<8x256xf32>
    %2 = tpu.matmul %0, %1, %cst {dimension_numbers = #tpu.dot_dimension_numbers<[1], [0], [0], [1], [0, 0, 1, 1], [], []>} : vector<8x784xf32>, vector<784x256xf32>, vector<8x256xf32> -> vector<8x256xf32>
    %c0_3 = arith.constant 0 : index
    %c0_4 = arith.constant 0 : index
    %3 = vector.load %arg3[%c0_3, %c0_4] : memref<1x256xf32, #tpu.memory_space<vmem>>, vector<1x256xf32>
    %4 = vector.broadcast %3 : vector<1x256xf32> to vector<8x256xf32>
    %5 = arith.addf %2, %4 : vector<8x256xf32>
    %cst_5 = arith.constant 0.000000e+00 : f32
    %6 = vector.broadcast %cst_5 : f32 to vector<8x256xf32>
    %7 = arith.maximumf %5, %6 : vector<8x256xf32>
    %c0_6 = arith.constant 0 : index
    %c0_7 = arith.constant 0 : index
    %8 = vector.load %arg4[%c0_6, %c0_7] : memref<256x128xf32, #tpu.memory_space<vmem>>, vector<256x128xf32>
    %cst_8 = arith.constant dense<0.000000e+00> : vector<8x128xf32>
    %9 = tpu.matmul %7, %8, %cst_8 {dimension_numbers = #tpu.dot_dimension_numbers<[1], [0], [0], [1], [0, 0, 1, 1], [], []>} : vector<8x256xf32>, vector<256x128xf32>, vector<8x128xf32> -> vector<8x128xf32>
    %c0_9 = arith.constant 0 : index
    %c0_10 = arith.constant 0 : index
    %10 = vector.load %arg5[%c0_9, %c0_10] : memref<1x128xf32, #tpu.memory_space<vmem>>, vector<1x128xf32>
    %11 = vector.broadcast %10 : vector<1x128xf32> to vector<8x128xf32>
    %12 = arith.addf %9, %11 : vector<8x128xf32>
    %c0_11 = arith.constant 0 : index
    %c0_12 = arith.constant 0 : index
    %13 = vector.load %arg6[%c0_11, %c0_12] : memref<8x128xf32, #tpu.memory_space<vmem>>, vector<8x128xf32>
    tpu.vector_store %arg6[%c0_11, %c0_12], %12 {strides = array<i32>} : memref<8x128xf32, #tpu.memory_space<vmem>>, vector<8x128xf32>,
    return
  }
  func.func @transform_0(%arg0: i32) -> (i32, i32) {
    %c0_i32 = arith.constant 0 : i32
    %c0_i32_0 = arith.constant 0 : i32
    return %arg0, %c0_i32 : i32, i32
  }
  func.func @transform_1(%arg0: i32) -> (i32, i32) {
    %c0_i32 = arith.constant 0 : i32
    %c0_i32_0 = arith.constant 0 : i32
    %c0_i32_1 = arith.constant 0 : i32
    return %c0_i32, %c0_i32_0 : i32, i32
  }
  func.func @transform_2(%arg0: i32) -> (i32, i32) {
    %c0_i32 = arith.constant 0 : i32
    %c0_i32_0 = arith.constant 0 : i32
    %c0_i32_1 = arith.constant 0 : i32
    return %c0_i32, %c0_i32_0 : i32, i32
  }
  func.func @transform_3(%arg0: i32) -> (i32, i32) {
    %c0_i32 = arith.constant 0 : i32
    %c0_i32_0 = arith.constant 0 : i32
    %c0_i32_1 = arith.constant 0 : i32
    return %c0_i32, %c0_i32_0 : i32, i32
  }
  func.func @transform_4(%arg0: i32) -> (i32, i32) {
    %c0_i32 = arith.constant 0 : i32
    %c0_i32_0 = arith.constant 0 : i32
    %c0_i32_1 = arith.constant 0 : i32
    return %c0_i32, %c0_i32_0 : i32, i32
  }
  func.func @transform_5(%arg0: i32) -> (i32, i32) {
    %c0_i32 = arith.constant 0 : i32
    %c0_i32_0 = arith.constant 0 : i32
    return %arg0, %c0_i32 : i32, i32
  }
}

</mosaic_0001>

<llo_original>
// kernel: my_sequential_forward.1
$region0: #{my_sequential_forward.1}
  #allocation0 [shape = 'u32[]', space=smem, size = 0x4, offset = 0x4, fixed_abs, tag = 'smem constant byte address 0x4 - core index']
  #allocation1 [shape = 'u32[144,128]{1,0:T(1,128)}', space=vmem, size = 0x12000, scoped, tag = 'internal scratch']
  %s0 = inlined_call_operand.vmem [shape: f32[8,784], index: 0, kind: input, shape index: {}]
  %s1 = inlined_call_operand.hbm [shape: f32[784,256], index: 1, kind: input, shape index: {}]
  %s2 = inlined_call_operand.vmem [shape: f32[1,256], index: 2, kind: input, shape index: {}]
  %s3 = inlined_call_operand.vmem [shape: f32[256,128], index: 3, kind: input, shape index: {}]
  %s4 = inlined_call_operand.vmem [shape: f32[1,128], index: 4, kind: input, shape index: {}]
  %s5 = inlined_call_operand.vmem [shape: f32[8,128], index: 5, kind: output, shape index: {}]
  %s6 = sld [smem:[#allocation0]]
  $region34: #{my_sequential_forward.1} parent=0
    _
  %s8 = ssub.s32 1, %s6
  %s9 = scalar_select 0, %s8, %s6
  $region1: #{my_sequential_forward.1} parent=0
    #allocation2 [shape = 'u8[802816]{0}', space=vmem, size = 0xc4000, scoped, tag = 'input window, operand 1, single buffered']
    #allocation3 [shape = 's32[1]{0}', space=sflag, size = 0x4, scoped, tag = 'scoped memory for my_sequential_forward.1']
    %10 = vsyncpa [#allocation3], 0
    // Predicated region
    $region2: #{my_sequential_forward.1} parent=1 // pred_check
      _
    $region3: #{my_sequential_forward.1} parent=1 // pred_check_branch
      %12 = sbr.rel (0) target = $region5
    $region4: #{my_sequential_forward.1} parent=1 // pred_region
      _
    $region5: #{my_sequential_forward.1} parent=1 // pred_fallthru
      _
    // Predicated region
    $region6: #{my_sequential_forward.1} parent=1 // pred_check
      _
    $region7: #{my_sequential_forward.1} parent=1 // pred_check_branch
      %14 = sbr.rel (0) target = $region9
    $region8: #{my_sequential_forward.1} parent=1 // pred_region
      %s16 = ssub.s32 25088, 25088
      %17 = vsyncadd [#allocation3], %s16
      %s18 = sshll.u32 [#allocation2], 4
      %s19 = int_to_ptr.vmem [resolvable:$true] %s18
      %24 = dma.hbm_to_vmem [thread:$0]  %s1, 25088, %s19, [#allocation3], 256, 256, 16
    $region9: #{my_sequential_forward.1} parent=1 // pred_fallthru
      _
    // Predicated region
    $region10: #{my_sequential_forward.1} parent=1 // pred_check
      _
    $region11: #{my_sequential_forward.1} parent=1 // pred_check_branch
      %26 = sbr.rel (0) target = $region13
    $region12: #{my_sequential_forward.1} parent=1 // pred_region
      _
    $region13: #{my_sequential_forward.1} parent=1 // pred_fallthru
      _
    // Predicated region
    $region14: #{my_sequential_forward.1} parent=1 // pred_check
      _
    $region15: #{my_sequential_forward.1} parent=1 // pred_check_branch
      %28 = sbr.rel (0) target = $region17
    $region16: #{my_sequential_forward.1} parent=1 // pred_region
      _
    $region17: #{my_sequential_forward.1} parent=1 // pred_fallthru
      _
    // Predicated region
    $region18: #{my_sequential_forward.1} parent=1 // pred_check
      _
    $region19: #{my_sequential_forward.1} parent=1 // pred_check_branch
      %30 = sbr.rel (0) target = $region21
    $region20: #{my_sequential_forward.1} parent=1 // pred_region
      _
    $region21: #{my_sequential_forward.1} parent=1 // pred_fallthru
      _
    // Predicated region
    $region22: #{my_sequential_forward.1} parent=1 // pred_check
      _
    $region23: #{my_sequential_forward.1} parent=1 // pred_check_branch
      %32 = sbr.rel (0) target = $region25
    $region24: #{my_sequential_forward.1} parent=1 // pred_region
      %33 = dma.done [#allocation3], 25088
    $region25: #{my_sequential_forward.1} parent=1 // pred_fallthru
      _
    %v34 = vld [vmem:[%s0] sm:$0xff]
    %v35 = vld [vmem:[%s0 + $0x8] sm:$0xff]
    %v36 = vld [vmem:[%s0 + $0x10] sm:$0xff]
    %v37 = vld [vmem:[%s0 + $0x18] sm:$0xff]
    %v38 = vld [vmem:[%s0 + $0x20] sm:$0xff]
    %v39 = vld [vmem:[%s0 + $0x28] sm:$0xff]
    %v40 = vld [vmem:[%s0 + $0x30] sm:$0xff]
    %v41 = vld [vmem:[#allocation2] sm:$0xff]
    %v42 = vld [vmem:[#allocation2 + $0x8] sm:$0xff]
    %v43 = vld [vmem:[#allocation2 + $0x10] sm:$0xff]
    %v44 = vld [vmem:[#allocation2 + $0x18] sm:$0xff]
    %v45 = vld [vmem:[#allocation2 + $0x20] sm:$0xff]
    %v46 = vld [vmem:[#allocation2 + $0x28] sm:$0xff]
    %v47 = vld [vmem:[#allocation2 + $0x30] sm:$0xff]
    %v48 = vld [vmem:[#allocation2 + $0x38] sm:$0xff]
    %v49 = vld [vmem:[#allocation2 + $0x40] sm:$0xff]
    %v50 = vld [vmem:[#allocation2 + $0x48] sm:$0xff]
    %v51 = vld [vmem:[#allocation2 + $0x50] sm:$0xff]
    %v52 = vld [vmem:[#allocation2 + $0x58] sm:$0xff]
    %v53 = vld [vmem:[#allocation2 + $0x60] sm:$0xff]
    %v54 = vld [vmem:[#allocation2 + $0x68] sm:$0xff]
    %v55 = vld [vmem:[#allocation2 + $0x70] sm:$0xff]
    %v56 = vld [vmem:[#allocation2 + $0x78] sm:$0xff]
    %v57 = vld [vmem:[#allocation2 + $0x80] sm:$0xff]
    %v58 = vld [vmem:[#allocation2 + $0x88] sm:$0xff]
    %v59 = vld [vmem:[#allocation2 + $0x90] sm:$0xff]
    %v60 = vld [vmem:[#allocation2 + $0x98] sm:$0xff]
    %v61 = vld [vmem:[#allocation2 + $0xa0] sm:$0xff]
    %v62 = vld [vmem:[#allocation2 + $0xa8] sm:$0xff]
    %v63 = vld [vmem:[#allocation2 + $0xb0] sm:$0xff]
    %v64 = vld [vmem:[#allocation2 + $0xb8] sm:$0xff]
    %v65 = vld [vmem:[#allocation2 + $0xc0] sm:$0xff]
    %v66 = vld [vmem:[#allocation2 + $0xc8] sm:$0xff]
    %v67 = vld [vmem:[#allocation2 + $0xd0] sm:$0xff]
    %v68 = vld [vmem:[#allocation2 + $0xd8] sm:$0xff]
    %v69 = vld [vmem:[#allocation2 + $0xe0] sm:$0xff]
    %v70 = vld [vmem:[#allocation2 + $0xe8] sm:$0xff]
    %v71 = vld [vmem:[#allocation2 + $0xf0] sm:$0xff]
    %v72 = vld [vmem:[#allocation2 + $0xf8] sm:$0xff]
    %v73 = vld [vmem:[#allocation2 + $0x100] sm:$0xff]
    %v74 = vld [vmem:[#allocation2 + $0x108] sm:$0xff]
    %v75 = vld [vmem:[#allocation2 + $0x110] sm:$0xff]
    %v76 = vld [vmem:[#allocation2 + $0x118] sm:$0xff]
    %v77 = vld [vmem:[#allocation2 + $0x120] sm:$0xff]
    %v78 = vld [vmem:[#allocation2 + $0x128] sm:$0xff]
    %v79 = vld [vmem:[#allocation2 + $0x130] sm:$0xff]
    %v80 = vld [vmem:[#allocation2 + $0x138] sm:$0xff]
    %v81 = vld [vmem:[#allocation2 + $0x140] sm:$0xff]
    %v82 = vld [vmem:[#allocation2 + $0x148] sm:$0xff]
    %v83 = vld [vmem:[#allocation2 + $0x150] sm:$0xff]
    %v84 = vld [vmem:[#allocation2 + $0x158] sm:$0xff]
    %v85 = vld [vmem:[#allocation2 + $0x160] sm:$0xff]
    %v86 = vld [vmem:[#allocation2 + $0x168] sm:$0xff]
    %v87 = vld [vmem:[#allocation2 + $0x170] sm:$0xff]
    %v88 = vld [vmem:[#allocation2 + $0x178] sm:$0xff]
    %v89 = vld [vmem:[#allocation2 + $0x180] sm:$0xff]
    %v90 = vld [vmem:[#allocation2 + $0x188] sm:$0xff]
    %v91 = vld [vmem:[#allocation2 + $0x190] sm:$0xff]
    %v92 = vld [vmem:[#allocation2 + $0x198] sm:$0xff]
    %v93 = vld [vmem:[#allocation2 + $0x1a0] sm:$0xff]
    %v94 = vld [vmem:[#allocation2 + $0x1a8] sm:$0xff]
    %v95 = vld [vmem:[#allocation2 + $0x1b0] sm:$0xff]
    %v96 = vld [vmem:[#allocation2 + $0x1b8] sm:$0xff]
    %v97 = vld [vmem:[#allocation2 + $0x1c0] sm:$0xff]
    %v98 = vld [vmem:[#allocation2 + $0x1c8] sm:$0xff]
    %v99 = vld [vmem:[#allocation2 + $0x1d0] sm:$0xff]
    %v100 = vld [vmem:[#allocation2 + $0x1d8] sm:$0xff]
    %v101 = vld [vmem:[#allocation2 + $0x1e0] sm:$0xff]
    %v102 = vld [vmem:[#allocation2 + $0x1e8] sm:$0xff]
    %v103 = vld [vmem:[#allocation2 + $0x1f0] sm:$0xff]
    %v104 = vld [vmem:[#allocation2 + $0x1f8] sm:$0xff]
    %v105 = vld [vmem:[#allocation2 + $0x200] sm:$0xff]
    %v106 = vld [vmem:[#allocation2 + $0x208] sm:$0xff]
    %v107 = vld [vmem:[#allocation2 + $0x210] sm:$0xff]
    %v108 = vld [vmem:[#allocation2 + $0x218] sm:$0xff]
    %v109 = vld [vmem:[#allocation2 + $0x220] sm:$0xff]
    %v110 = vld [vmem:[#allocation2 + $0x228] sm:$0xff]
    %v111 = vld [vmem:[#allocation2 + $0x230] sm:$0xff]
    %v112 = vld [vmem:[#allocation2 + $0x238] sm:$0xff]
    %v113 = vld [vmem:[#allocation2 + $0x240] sm:$0xff]
    %v114 = vld [vmem:[#allocation2 + $0x248] sm:$0xff]
    %v115 = vld [vmem:[#allocation2 + $0x250] sm:$0xff]
    %v116 = vld [vmem:[#allocation2 + $0x258] sm:$0xff]
    %v117 = vld [vmem:[#allocation2 + $0x260] sm:$0xff]
    %v118 = vld [vmem:[#allocation2 + $0x268] sm:$0xff]
    %v119 = vld [vmem:[#allocation2 + $0x270] sm:$0xff]
    %v120 = vld [vmem:[#allocation2 + $0x278] sm:$0xff]
    %v121 = vld [vmem:[#allocation2 + $0x280] sm:$0xff]
    %v122 = vld [vmem:[#allocation2 + $0x288] sm:$0xff]
    %v123 = vld [vmem:[#allocation2 + $0x290] sm:$0xff]
    %v124 = vld [vmem:[#allocation2 + $0x298] sm:$0xff]
    %v125 = vld [vmem:[#allocation2 + $0x2a0] sm:$0xff]
    %v126 = vld [vmem:[#allocation2 + $0x2a8] sm:$0xff]
    %v127 = vld [vmem:[#allocation2 + $0x2b0] sm:$0xff]
    %v128 = vld [vmem:[#allocation2 + $0x2b8] sm:$0xff]
    %v129 = vld [vmem:[#allocation2 + $0x2c0] sm:$0xff]
    %v130 = vld [vmem:[#allocation2 + $0x2c8] sm:$0xff]
    %v131 = vld [vmem:[#allocation2 + $0x2d0] sm:$0xff]
    %v132 = vld [vmem:[#allocation2 + $0x2d8] sm:$0xff]
    %v133 = vld [vmem:[#allocation2 + $0x2e0] sm:$0xff]
    %v134 = vld [vmem:[#allocation2 + $0x2e8] sm:$0xff]
    %v135 = vld [vmem:[#allocation2 + $0x2f0] sm:$0xff]
    %v136 = vld [vmem:[#allocation2 + $0x2f8] sm:$0xff]
    %v137 = vld [vmem:[#allocation2 + $0x300] sm:$0xff]
    %v138 = vld [vmem:[#allocation2 + $0x308] sm:$0xff]
    %v139 = vld [vmem:[#allocation2 + $0x310] sm:$0xff]
    %v140 = vld [vmem:[#allocation2 + $0x318] sm:$0xff]
    %v141 = vld [vmem:[#allocation2 + $0x320] sm:$0xff]
    %v142 = vld [vmem:[#allocation2 + $0x328] sm:$0xff]
    %v143 = vld [vmem:[#allocation2 + $0x330] sm:$0xff]
    %v144 = vld [vmem:[#allocation2 + $0x338] sm:$0xff]
    %v145 = vld [vmem:[#allocation2 + $0x340] sm:$0xff]
    %v146 = vld [vmem:[#allocation2 + $0x348] sm:$0xff]
    %v147 = vld [vmem:[#allocation2 + $0x350] sm:$0xff]
    %v148 = vld [vmem:[#allocation2 + $0x358] sm:$0xff]
    %v149 = vld [vmem:[#allocation2 + $0x360] sm:$0xff]
    %v150 = vld [vmem:[#allocation2 + $0x368] sm:$0xff]
    %v151 = vld [vmem:[#allocation2 + $0x370] sm:$0xff]
    %v152 = vld [vmem:[#allocation2 + $0x378] sm:$0xff]
    %v153 = vld [vmem:[#allocation2 + $0x380] sm:$0xff]
    %v154 = vld [vmem:[#allocation2 + $0x388] sm:$0xff]
    %v155 = vld [vmem:[#allocation2 + $0x390] sm:$0xff]
    %v156 = vld [vmem:[#allocation2 + $0x398] sm:$0xff]
    %v157 = vld [vmem:[#allocation2 + $0x3a0] sm:$0xff]
    %v158 = vld [vmem:[#allocation2 + $0x3a8] sm:$0xff]
    %v159 = vld [vmem:[#allocation2 + $0x3b0] sm:$0xff]
    %v160 = vld [vmem:[#allocation2 + $0x3b8] sm:$0xff]
    %v161 = vld [vmem:[#allocation2 + $0x3c0] sm:$0xff]
    %v162 = vld [vmem:[#allocation2 + $0x3c8] sm:$0xff]
    %v163 = vld [vmem:[#allocation2 + $0x3d0] sm:$0xff]
    %v164 = vld [vmem:[#allocation2 + $0x3d8] sm:$0xff]
    %v165 = vld [vmem:[#allocation2 + $0x3e0] sm:$0xff]
    %v166 = vld [vmem:[#allocation2 + $0x3e8] sm:$0xff]
    %v167 = vld [vmem:[#allocation2 + $0x3f0] sm:$0xff]
    %v168 = vld [vmem:[#allocation2 + $0x3f8] sm:$0xff]
    %v169 = vld [vmem:[#allocation2 + $0x400] sm:$0xff]
    %v170 = vld [vmem:[#allocation2 + $0x408] sm:$0xff]
    %v171 = vld [vmem:[#allocation2 + $0x410] sm:$0xff]
    %v172 = vld [vmem:[#allocation2 + $0x418] sm:$0xff]
    %v173 = vld [vmem:[#allocation2 + $0x420] sm:$0xff]
    %v174 = vld [vmem:[#allocation2 + $0x428] sm:$0xff]
    %v175 = vld [vmem:[#allocation2 + $0x430] sm:$0xff]
    %v176 = vld [vmem:[#allocation2 + $0x438] sm:$0xff]
    %v177 = vld [vmem:[#allocation2 + $0x440] sm:$0xff]
    %v178 = vld [vmem:[#allocation2 + $0x448] sm:$0xff]
    %v179 = vld [vmem:[#allocation2 + $0x450] sm:$0xff]
    %v180 = vld [vmem:[#allocation2 + $0x458] sm:$0xff]
    %v181 = vld [vmem:[#allocation2 + $0x460] sm:$0xff]
    %v182 = vld [vmem:[#allocation2 + $0x468] sm:$0xff]
    %v183 = vld [vmem:[#allocation2 + $0x470] sm:$0xff]
    %v184 = vld [vmem:[#allocation2 + $0x478] sm:$0xff]
    %v185 = vld [vmem:[#allocation2 + $0x480] sm:$0xff]
    %v186 = vld [vmem:[#allocation2 + $0x488] sm:$0xff]
    %v187 = vld [vmem:[#allocation2 + $0x490] sm:$0xff]
    %v188 = vld [vmem:[#allocation2 + $0x498] sm:$0xff]
    %v189 = vld [vmem:[#allocation2 + $0x4a0] sm:$0xff]
    %v190 = vld [vmem:[#allocation2 + $0x4a8] sm:$0xff]
    %v191 = vld [vmem:[#allocation2 + $0x4b0] sm:$0xff]
    %v192 = vld [vmem:[#allocation2 + $0x4b8] sm:$0xff]
    %v193 = vld [vmem:[#allocation2 + $0x4c0] sm:$0xff]
    %v194 = vld [vmem:[#allocation2 + $0x4c8] sm:$0xff]
    %v195 = vld [vmem:[#allocation2 + $0x4d0] sm:$0xff]
    %v196 = vld [vmem:[#allocation2 + $0x4d8] sm:$0xff]
    %v197 = vld [vmem:[#allocation2 + $0x4e0] sm:$0xff]
    %v198 = vld [vmem:[#allocation2 + $0x4e8] sm:$0xff]
    %v199 = vld [vmem:[#allocation2 + $0x4f0] sm:$0xff]
    %v200 = vld [vmem:[#allocation2 + $0x4f8] sm:$0xff]
    %v201 = vld [vmem:[#allocation2 + $0x500] sm:$0xff]
    %v202 = vld [vmem:[#allocation2 + $0x508] sm:$0xff]
    %v203 = vld [vmem:[#allocation2 + $0x510] sm:$0xff]
    %v204 = vld [vmem:[#allocation2 + $0x518] sm:$0xff]
    %v205 = vld [vmem:[#allocation2 + $0x520] sm:$0xff]
    %v206 = vld [vmem:[#allocation2 + $0x528] sm:$0xff]
    %v207 = vld [vmem:[#allocation2 + $0x530] sm:$0xff]
    %v208 = vld [vmem:[#allocation2 + $0x538] sm:$0xff]
    %v209 = vld [vmem:[#allocation2 + $0x540] sm:$0xff]
    %v210 = vld [vmem:[#allocation2 + $0x548] sm:$0xff]
    %v211 = vld [vmem:[#allocation2 + $0x550] sm:$0xff]
    %v212 = vld [vmem:[#allocation2 + $0x558] sm:$0xff]
    %v213 = vld [vmem:[#allocation2 + $0x560] sm:$0xff]
    %v214 = vld [vmem:[#allocation2 + $0x568] sm:$0xff]
    %v215 = vld [vmem:[#allocation2 + $0x570] sm:$0xff]
    %v216 = vld [vmem:[#allocation2 + $0x578] sm:$0xff]
    %v217 = vld [vmem:[#allocation2 + $0x580] sm:$0xff]
    %v218 = vld [vmem:[#allocation2 + $0x588] sm:$0xff]
    %v219 = vld [vmem:[#allocation2 + $0x590] sm:$0xff]
    %v220 = vld [vmem:[#allocation2 + $0x598] sm:$0xff]
    %v221 = vld [vmem:[#allocation2 + $0x5a0] sm:$0xff]
    %v222 = vld [vmem:[#allocation2 + $0x5a8] sm:$0xff]
    %v223 = vld [vmem:[#allocation2 + $0x5b0] sm:$0xff]
    %v224 = vld [vmem:[#allocation2 + $0x5b8] sm:$0xff]
    %v225 = vld [vmem:[#allocation2 + $0x5c0] sm:$0xff]
    %v226 = vld [vmem:[#allocation2 + $0x5c8] sm:$0xff]
    %v227 = vld [vmem:[#allocation2 + $0x5d0] sm:$0xff]
    %v228 = vld [vmem:[#allocation2 + $0x5d8] sm:$0xff]
    %v229 = vld [vmem:[#allocation2 + $0x5e0] sm:$0xff]
    %v230 = vld [vmem:[#allocation2 + $0x5e8] sm:$0xff]
    %v231 = vld [vmem:[#allocation2 + $0x5f0] sm:$0xff]
    %v232 = vld [vmem:[#allocation2 + $0x5f8] sm:$0xff]
    %v233 = vld [vmem:[#allocation2 + $0x600] sm:$0xff]
    %v234 = vld [vmem:[#allocation2 + $0x608] sm:$0xff]
    %v235 = vld [vmem:[#allocation2 + $0x610] sm:$0xff]
    %v236 = vld [vmem:[#allocation2 + $0x618] sm:$0xff]
    %v237 = vld [vmem:[%s2] sm:$0x3]
    %v239 = vlaneseq
    %v240 = vshrl.u32 %v239, 7
    %v241 = vsub.s32 0, %v240
    %v242 = vrot.slane %v237, %v241
    %v243 = vlaneseq
    %v244 = vshrl.u32 %v243, 7
    %v245 = vsub.s32 1, %v244
    %v246 = vrot.slane %v237, %v245
    %vm249 = vcmask 130048
    %v251 = vsel %vm249, %v40, 0
    %253 = vmatprep.subr.mxu0 %v42
    %254 = vmatpush1.msra.mxu0 %v41
    %255 = vmatprep.subr.mxu0 %v44
    %256 = vmatpush1.msra.mxu0 %v43
    %257 = vmatprep.subr.mxu0 %v46
    %258 = vmatpush1.msra.mxu0 %v45
    %259 = vmatprep.subr.mxu0 %v48
    %260 = vmatpush1.msra.mxu0 %v47
    %261 = vmatprep.subr.mxu0 %v50
    %262 = vmatpush1.msra.mxu0 %v49
    %263 = vmatprep.subr.mxu0 %v52
    %264 = vmatpush1.msra.mxu0 %v51
    %265 = vmatprep.subr.mxu0 %v54
    %266 = vmatpush1.msra.mxu0 %v53
    %267 = vmatprep.subr.mxu0 %v56
    %268 = vmatpush1.msra.mxu0 %v55
    %269 = vmatprep.subr.mxu0 %v58
    %270 = vmatpush1.msra.mxu0 %v57
    %271 = vmatprep.subr.mxu0 %v60
    %272 = vmatpush1.msra.mxu0 %v59
    %273 = vmatprep.subr.mxu0 %v62
    %274 = vmatpush1.msra.mxu0 %v61
    %275 = vmatprep.subr.mxu0 %v64
    %276 = vmatpush1.msra.mxu0 %v63
    %277 = vmatprep.subr.mxu0 %v66
    %278 = vmatpush1.msra.mxu0 %v65
    %279 = vmatprep.subr.mxu0 %v68
    %280 = vmatpush1.msra.mxu0 %v67
    %281 = vmatprep.subr.mxu0 %v70
    %282 = vmatpush1.msra.mxu0 %v69
    %283 = vmatprep.subr.mxu0 %v72
    %284 = vmatpush1.msra.mxu0 %v71
    %285 = vmatprep.subr.mxu0 %v74
    %286 = vmatpush1.msra.mxu0 %v73
    %287 = vmatprep.subr.mxu0 %v76
    %288 = vmatpush1.msra.mxu0 %v75
    %289 = vmatprep.subr.mxu0 %v78
    %290 = vmatpush1.msra.mxu0 %v77
    %291 = vmatprep.subr.mxu0 %v80
    %292 = vmatpush1.msra.mxu0 %v79
    %293 = vmatprep.subr.mxu0 %v82
    %294 = vmatpush1.msra.mxu0 %v81
    %295 = vmatprep.subr.mxu0 %v84
    %296 = vmatpush1.msra.mxu0 %v83
    %297 = vmatprep.subr.mxu0 %v86
    %298 = vmatpush1.msra.mxu0 %v85
    %299 = vmatprep.subr.mxu0 %v88
    %300 = vmatpush1.msra.mxu0 %v87
    %301 = vmatprep.subr.mxu0 %v90
    %302 = vmatpush1.msra.mxu0 %v89
    %303 = vmatprep.subr.mxu0 %v92
    %304 = vmatpush1.msra.mxu0 %v91
    %305 = vmatprep.subr.mxu0 %v94
    %306 = vmatpush1.msra.mxu0 %v93
    %307 = vmatprep.subr.mxu0 %v96
    %308 = vmatpush1.msra.mxu0 %v95
    %309 = vmatprep.subr.mxu0 %v98
    %310 = vmatpush1.msra.mxu0 %v97
    %311 = vmatprep.subr.mxu0 %v100
    %312 = vmatpush1.msra.mxu0 %v99
    %313 = vmatprep.subr.mxu0 %v102
    %314 = vmatpush1.msra.mxu0 %v101
    %315 = vmatprep.subr.mxu0 %v104
    %316 = vmatpush1.msra.mxu0 %v103
    %317 = vmatprep.mubr.f32.mxu0 %v35
    %318 = vmatmul.mubr.f32.gmra.mrb[0].mxu0 %v34
    %v319 = vpop.f32.mrb[0].mxu0
    %v320 = vadd.f32 %v242, %v319
    %v321 = vpop.f32.mrb[0].mxu0
    %v322 = vadd.f32 %v246, %v321
    %323 = vdwg.mxu0
    %324 = vmatprep.subr.mxu0 %v106
    %325 = vmatpush1.msra.mxu0 %v105
    %326 = vmatprep.subr.mxu0 %v108
    %327 = vmatpush1.msra.mxu0 %v107
    %328 = vmatprep.subr.mxu0 %v110
    %329 = vmatpush1.msra.mxu0 %v109
    %330 = vmatprep.subr.mxu0 %v112
    %331 = vmatpush1.msra.mxu0 %v111
    %332 = vmatprep.subr.mxu0 %v114
    %333 = vmatpush1.msra.mxu0 %v113
    %334 = vmatprep.subr.mxu0 %v116
    %335 = vmatpush1.msra.mxu0 %v115
    %336 = vmatprep.subr.mxu0 %v118
    %337 = vmatpush1.msra.mxu0 %v117
    %338 = vmatprep.subr.mxu0 %v120
    %339 = vmatpush1.msra.mxu0 %v119
    %340 = vmatprep.subr.mxu0 %v122
    %341 = vmatpush1.msra.mxu0 %v121
    %342 = vmatprep.subr.mxu0 %v124
    %343 = vmatpush1.msra.mxu0 %v123
    %344 = vmatprep.subr.mxu0 %v126
    %345 = vmatpush1.msra.mxu0 %v125
    %346 = vmatprep.subr.mxu0 %v128
    %347 = vmatpush1.msra.mxu0 %v127
    %348 = vmatprep.subr.mxu0 %v130
    %349 = vmatpush1.msra.mxu0 %v129
    %350 = vmatprep.subr.mxu0 %v132
    %351 = vmatpush1.msra.mxu0 %v131
    %352 = vmatprep.subr.mxu0 %v134
    %353 = vmatpush1.msra.mxu0 %v133
    %354 = vmatprep.subr.mxu0 %v136
    %355 = vmatpush1.msra.mxu0 %v135
    %356 = vmatprep.subr.mxu0 %v138
    %357 = vmatpush1.msra.mxu0 %v137
    %358 = vmatprep.subr.mxu0 %v140
    %359 = vmatpush1.msra.mxu0 %v139
    %360 = vmatprep.subr.mxu0 %v142
    %361 = vmatpush1.msra.mxu0 %v141
    %362 = vmatprep.subr.mxu0 %v144
    %363 = vmatpush1.msra.mxu0 %v143
    %364 = vmatprep.subr.mxu0 %v146
    %365 = vmatpush1.msra.mxu0 %v145
    %366 = vmatprep.subr.mxu0 %v148
    %367 = vmatpush1.msra.mxu0 %v147
    %368 = vmatprep.subr.mxu0 %v150
    %369 = vmatpush1.msra.mxu0 %v149
    %370 = vmatprep.subr.mxu0 %v152
    %371 = vmatpush1.msra.mxu0 %v151
    %372 = vmatprep.subr.mxu0 %v154
    %373 = vmatpush1.msra.mxu0 %v153
    %374 = vmatprep.subr.mxu0 %v156
    %375 = vmatpush1.msra.mxu0 %v155
    %376 = vmatprep.subr.mxu0 %v158
    %377 = vmatpush1.msra.mxu0 %v157
    %378 = vmatprep.subr.mxu0 %v160
    %379 = vmatpush1.msra.mxu0 %v159
    %380 = vmatprep.subr.mxu0 %v162
    %381 = vmatpush1.msra.mxu0 %v161
    %382 = vmatprep.subr.mxu0 %v164
    %383 = vmatpush1.msra.mxu0 %v163
    %384 = vmatprep.subr.mxu0 %v166
    %385 = vmatpush1.msra.mxu0 %v165
    %386 = vmatprep.subr.mxu0 %v168
    %387 = vmatpush1.msra.mxu0 %v167
    %388 = vmatprep.mubr.f32.mxu0 %v37
    %389 = vmatmul.mubr.f32.gmra.mrb[0].mxu0 %v36
    %v390 = vpop.f32.mrb[0].mxu0
    %v391 = vadd.f32 %v320, %v390
    %v392 = vpop.f32.mrb[0].mxu0
    %v393 = vadd.f32 %v322, %v392
    %394 = vdwg.mxu0
    %395 = vmatprep.subr.mxu0 %v170
    %396 = vmatpush1.msra.mxu0 %v169
    %397 = vmatprep.subr.mxu0 %v172
    %398 = vmatpush1.msra.mxu0 %v171
    %399 = vmatprep.subr.mxu0 %v174
    %400 = vmatpush1.msra.mxu0 %v173
    %401 = vmatprep.subr.mxu0 %v176
    %402 = vmatpush1.msra.mxu0 %v175
    %403 = vmatprep.subr.mxu0 %v178
    %404 = vmatpush1.msra.mxu0 %v177
    %405 = vmatprep.subr.mxu0 %v180
    %406 = vmatpush1.msra.mxu0 %v179
    %407 = vmatprep.subr.mxu0 %v182
    %408 = vmatpush1.msra.mxu0 %v181
    %409 = vmatprep.subr.mxu0 %v184
    %410 = vmatpush1.msra.mxu0 %v183
    %411 = vmatprep.subr.mxu0 %v186
    %412 = vmatpush1.msra.mxu0 %v185
    %413 = vmatprep.subr.mxu0 %v188
    %414 = vmatpush1.msra.mxu0 %v187
    %415 = vmatprep.subr.mxu0 %v190
    %416 = vmatpush1.msra.mxu0 %v189
    %417 = vmatprep.subr.mxu0 %v192
    %418 = vmatpush1.msra.mxu0 %v191
    %419 = vmatprep.subr.mxu0 %v194
    %420 = vmatpush1.msra.mxu0 %v193
    %421 = vmatprep.subr.mxu0 %v196
    %422 = vmatpush1.msra.mxu0 %v195
    %423 = vmatprep.subr.mxu0 %v198
    %424 = vmatpush1.msra.mxu0 %v197
    %425 = vmatprep.subr.mxu0 %v200
    %426 = vmatpush1.msra.mxu0 %v199
    %427 = vmatprep.subr.mxu0 %v202
    %428 = vmatpush1.msra.mxu0 %v201
    %429 = vmatprep.subr.mxu0 %v204
    %430 = vmatpush1.msra.mxu0 %v203
    %431 = vmatprep.subr.mxu0 %v206
    %432 = vmatpush1.msra.mxu0 %v205
    %433 = vmatprep.subr.mxu0 %v208
    %434 = vmatpush1.msra.mxu0 %v207
    %435 = vmatprep.subr.mxu0 %v210
    %436 = vmatpush1.msra.mxu0 %v209
    %437 = vmatprep.subr.mxu0 %v212
    %438 = vmatpush1.msra.mxu0 %v211
    %439 = vmatprep.subr.mxu0 %v214
    %440 = vmatpush1.msra.mxu0 %v213
    %441 = vmatprep.subr.mxu0 %v216
    %442 = vmatpush1.msra.mxu0 %v215
    %443 = vmatprep.subr.mxu0 %v218
    %444 = vmatpush1.msra.mxu0 %v217
    %445 = vmatprep.subr.mxu0 %v220
    %446 = vmatpush1.msra.mxu0 %v219
    %447 = vmatprep.subr.mxu0 %v222
    %448 = vmatpush1.msra.mxu0 %v221
    %449 = vmatprep.subr.mxu0 %v224
    %450 = vmatpush1.msra.mxu0 %v223
    %451 = vmatprep.subr.mxu0 %v226
    %452 = vmatpush1.msra.mxu0 %v225
    %453 = vmatprep.subr.mxu0 %v228
    %454 = vmatpush1.msra.mxu0 %v227
    %455 = vmatprep.subr.mxu0 %v230
    %456 = vmatpush1.msra.mxu0 %v229
    %457 = vmatprep.subr.mxu0 %v232
    %458 = vmatpush1.msra.mxu0 %v231
    %459 = vmatprep.mubr.f32.mxu0 %v39
    %460 = vmatmul.mubr.f32.gmra.mrb[0].mxu0 %v38
    %v461 = vpop.f32.mrb[0].mxu0
    %v462 = vadd.f32 %v391, %v461
    %v463 = vpop.f32.mrb[0].mxu0
    %v464 = vadd.f32 %v393, %v463
    %465 = vdwg.mxu0
    %466 = vmatprep.subr.mxu0 %v234
    %467 = vmatpush1.msra.mxu0 %v233
    %468 = vmatprep.subr.mxu0 %v236
    %469 = vmatpush1.msra.mxu0 %v235
    %470 = vmatprep.subr.mxu0 0.0
    %471 = vmatpush1.msra.mxu0 0.0
    %472 = vmatprep.subr.mxu0 0.0
    %473 = vmatpush1.msra.mxu0 0.0
    %474 = vmatprep.subr.mxu0 0.0
    %475 = vmatpush1.msra.mxu0 0.0
    %476 = vmatprep.subr.mxu0 0.0
    %477 = vmatpush1.msra.mxu0 0.0
    %478 = vmatprep.subr.mxu0 0.0
    %479 = vmatpush1.msra.mxu0 0.0
    %480 = vmatprep.subr.mxu0 0.0
    %481 = vmatpush1.msra.mxu0 0.0
    %482 = vmatprep.subr.mxu0 0.0
    %483 = vmatpush1.msra.mxu0 0.0
    %484 = vmatprep.subr.mxu0 0.0
    %485 = vmatpush1.msra.mxu0 0.0
    %486 = vmatprep.subr.mxu0 0.0
    %487 = vmatpush1.msra.mxu0 0.0
    %488 = vmatprep.subr.mxu0 0.0
    %489 = vmatpush1.msra.mxu0 0.0
    %490 = vmatprep.subr.mxu0 0.0
    %491 = vmatpush1.msra.mxu0 0.0
    %492 = vmatprep.subr.mxu0 0.0
    %493 = vmatpush1.msra.mxu0 0.0
    %494 = vmatprep.subr.mxu0 0.0
    %495 = vmatpush1.msra.mxu0 0.0
    %496 = vmatprep.subr.mxu0 0.0
    %497 = vmatpush1.msra.mxu0 0.0
    %498 = vmatprep.subr.mxu0 0.0
    %499 = vmatpush1.msra.mxu0 0.0
    %500 = vmatprep.subr.mxu0 0.0
    %501 = vmatpush1.msra.mxu0 0.0
    %502 = vmatprep.subr.mxu0 0.0
    %503 = vmatpush1.msra.mxu0 0.0
    %504 = vmatprep.subr.mxu0 0.0
    %505 = vmatpush1.msra.mxu0 0.0
    %506 = vmatprep.subr.mxu0 0.0
    %507 = vmatpush1.msra.mxu0 0.0
    %508 = vmatprep.subr.mxu0 0.0
    %509 = vmatpush1.msra.mxu0 0.0
    %510 = vmatprep.subr.mxu0 0.0
    %511 = vmatpush1.msra.mxu0 0.0
    %512 = vmatprep.subr.mxu0 0.0
    %513 = vmatpush1.msra.mxu0 0.0
    %514 = vmatprep.subr.mxu0 0.0
    %515 = vmatpush1.msra.mxu0 0.0
    %516 = vmatprep.subr.mxu0 0.0
    %517 = vmatpush1.msra.mxu0 0.0
    %518 = vmatprep.subr.mxu0 0.0
    %519 = vmatpush1.msra.mxu0 0.0
    %520 = vmatprep.subr.mxu0 0.0
    %521 = vmatpush1.msra.mxu0 0.0
    %522 = vmatprep.subr.mxu0 0.0
    %523 = vmatpush1.msra.mxu0 0.0
    %524 = vmatprep.subr.mxu0 0.0
    %525 = vmatpush1.msra.mxu0 0.0
    %526 = vmatprep.subr.mxu0 0.0
    %527 = vmatpush1.msra.mxu0 0.0
    %528 = vmatprep.subr.mxu0 0.0
    %529 = vmatpush1.msra.mxu0 0.0
    %530 = vmatprep.mubr.f32.mxu0 0.0
    %531 = vmatmul.mubr.f32.gmra.mrb[0].mxu0 %v251
    %v532 = vpop.f32.mrb[0].mxu0
    %v533 = vadd.f32 %v462, %v532
    %v534 = vpop.f32.mrb[0].mxu0
    %v535 = vadd.f32 %v464, %v534
    %536 = vdwg.mxu0
    %v537 = vmax.f32 %v533, 0.0
    %v538 = vmax.f32 %v535, 0.0
    %v539 = vld [vmem:[%s3] sm:$0xff]
    %v540 = vld [vmem:[%s3 + $0x8] sm:$0xff]
    %v541 = vld [vmem:[%s3 + $0x10] sm:$0xff]
    %v542 = vld [vmem:[%s3 + $0x18] sm:$0xff]
    %v543 = vld [vmem:[%s3 + $0x20] sm:$0xff]
    %v544 = vld [vmem:[%s3 + $0x28] sm:$0xff]
    %v545 = vld [vmem:[%s3 + $0x30] sm:$0xff]
    %v546 = vld [vmem:[%s3 + $0x38] sm:$0xff]
    %v547 = vld [vmem:[%s3 + $0x40] sm:$0xff]
    %v548 = vld [vmem:[%s3 + $0x48] sm:$0xff]
    %v549 = vld [vmem:[%s3 + $0x50] sm:$0xff]
    %v550 = vld [vmem:[%s3 + $0x58] sm:$0xff]
    %v551 = vld [vmem:[%s3 + $0x60] sm:$0xff]
    %v552 = vld [vmem:[%s3 + $0x68] sm:$0xff]
    %v553 = vld [vmem:[%s3 + $0x70] sm:$0xff]
    %v554 = vld [vmem:[%s3 + $0x78] sm:$0xff]
    %v555 = vld [vmem:[%s3 + $0x80] sm:$0xff]
    %v556 = vld [vmem:[%s3 + $0x88] sm:$0xff]
    %v557 = vld [vmem:[%s3 + $0x90] sm:$0xff]
    %v558 = vld [vmem:[%s3 + $0x98] sm:$0xff]
    %v559 = vld [vmem:[%s3 + $0xa0] sm:$0xff]
    %v560 = vld [vmem:[%s3 + $0xa8] sm:$0xff]
    %v561 = vld [vmem:[%s3 + $0xb0] sm:$0xff]
    %v562 = vld [vmem:[%s3 + $0xb8] sm:$0xff]
    %v563 = vld [vmem:[%s3 + $0xc0] sm:$0xff]
    %v564 = vld [vmem:[%s3 + $0xc8] sm:$0xff]
    %v565 = vld [vmem:[%s3 + $0xd0] sm:$0xff]
    %v566 = vld [vmem:[%s3 + $0xd8] sm:$0xff]
    %v567 = vld [vmem:[%s3 + $0xe0] sm:$0xff]
    %v568 = vld [vmem:[%s3 + $0xe8] sm:$0xff]
    %v569 = vld [vmem:[%s3 + $0xf0] sm:$0xff]
    %v570 = vld [vmem:[%s3 + $0xf8] sm:$0xff]
    %v571 = vld [vmem:[%s4] sm:$0x1]
    %v573 = vlaneseq
    %v574 = vshrl.u32 %v573, 7
    %v575 = vsub.s32 0, %v574
    %v576 = vrot.slane %v571, %v575
    %578 = vmatprep.subr.mxu0 0.0
    %579 = vmatpush1.msra.mxu0 %v539
    %580 = vmatprep.subr.mxu0 0.0
    %581 = vmatpush1.msra.mxu0 %v540
    %582 = vmatprep.subr.mxu0 0.0
    %583 = vmatpush1.msra.mxu0 %v541
    %584 = vmatprep.subr.mxu0 0.0
    %585 = vmatpush1.msra.mxu0 %v542
    %586 = vmatprep.subr.mxu0 0.0
    %587 = vmatpush1.msra.mxu0 %v543
    %588 = vmatprep.subr.mxu0 0.0
    %589 = vmatpush1.msra.mxu0 %v544
    %590 = vmatprep.subr.mxu0 0.0
    %591 = vmatpush1.msra.mxu0 %v545
    %592 = vmatprep.subr.mxu0 0.0
    %593 = vmatpush1.msra.mxu0 %v546
    %594 = vmatprep.subr.mxu0 0.0
    %595 = vmatpush1.msra.mxu0 %v547
    %596 = vmatprep.subr.mxu0 0.0
    %597 = vmatpush1.msra.mxu0 %v548
    %598 = vmatprep.subr.mxu0 0.0
    %599 = vmatpush1.msra.mxu0 %v549
    %600 = vmatprep.subr.mxu0 0.0
    %601 = vmatpush1.msra.mxu0 %v550
    %602 = vmatprep.subr.mxu0 0.0
    %603 = vmatpush1.msra.mxu0 %v551
    %604 = vmatprep.subr.mxu0 0.0
    %605 = vmatpush1.msra.mxu0 %v552
    %606 = vmatprep.subr.mxu0 0.0
    %607 = vmatpush1.msra.mxu0 %v553
    %608 = vmatprep.subr.mxu0 0.0
    %609 = vmatpush1.msra.mxu0 %v554
    %610 = vmatprep.subr.mxu0 0.0
    %611 = vmatpush1.msra.mxu0 %v555
    %612 = vmatprep.subr.mxu0 0.0
    %613 = vmatpush1.msra.mxu0 %v556
    %614 = vmatprep.subr.mxu0 0.0
    %615 = vmatpush1.msra.mxu0 %v557
    %616 = vmatprep.subr.mxu0 0.0
    %617 = vmatpush1.msra.mxu0 %v558
    %618 = vmatprep.subr.mxu0 0.0
    %619 = vmatpush1.msra.mxu0 %v559
    %620 = vmatprep.subr.mxu0 0.0
    %621 = vmatpush1.msra.mxu0 %v560
    %622 = vmatprep.subr.mxu0 0.0
    %623 = vmatpush1.msra.mxu0 %v561
    %624 = vmatprep.subr.mxu0 0.0
    %625 = vmatpush1.msra.mxu0 %v562
    %626 = vmatprep.subr.mxu0 0.0
    %627 = vmatpush1.msra.mxu0 %v563
    %628 = vmatprep.subr.mxu0 0.0
    %629 = vmatpush1.msra.mxu0 %v564
    %630 = vmatprep.subr.mxu0 0.0
    %631 = vmatpush1.msra.mxu0 %v565
    %632 = vmatprep.subr.mxu0 0.0
    %633 = vmatpush1.msra.mxu0 %v566
    %634 = vmatprep.subr.mxu0 0.0
    %635 = vmatpush1.msra.mxu0 %v567
    %636 = vmatprep.subr.mxu0 0.0
    %637 = vmatpush1.msra.mxu0 %v568
    %638 = vmatprep.subr.mxu0 0.0
    %639 = vmatpush1.msra.mxu0 %v569
    %640 = vmatprep.subr.mxu0 0.0
    %641 = vmatpush1.msra.mxu0 %v570
    %642 = vmatprep.mubr.f32.mxu0 %v538
    %643 = vmatmul.mubr.f32.gmra.mrb[0].mxu0 %v537
    %v644 = vpop.f32.mrb[0].mxu0
    %v645 = vadd.f32 %v576, %v644
    %v646 = vpop.f32.mrb[0].mxu0
    %647 = vdwg.mxu0
    %648 = vst [vmem:[%s5] sm:$0xff] %v645
    // Predicated region
    $region26: #{my_sequential_forward.1} parent=1 // pred_check
      _
    $region27: #{my_sequential_forward.1} parent=1 // pred_check_branch
      %650 = sbr.rel (0) target = $region29
    $region28: #{my_sequential_forward.1} parent=1 // pred_region
      _
    $region29: #{my_sequential_forward.1} parent=1 // pred_fallthru
      _
    // Predicated region
    $region30: #{my_sequential_forward.1} parent=1 // pred_check
      _
    $region31: #{my_sequential_forward.1} parent=1 // pred_check_branch
      %652 = sbr.rel (0) target = $region33
    $region32: #{my_sequential_forward.1} parent=1 // pred_region
      _
    $region33: #{my_sequential_forward.1} parent=1 // pred_fallthru
      _
    %653 = vsyncpa [#allocation3], 1

</llo_original>
